<compile_context>
chip_gen: v5e
topology: v5e:2x2
jax: 0.10.0
libtpu: 0.0.40
codegen_flags: <defaults>
</compile_context>

<pallas_src>
import functools

import jax
import jax.numpy as jnp
from jax.experimental import pallas as pl
from jax.experimental.pallas import tpu as pltpu


def _round_up(v, m):
    return (v + m - 1) // m * m


def _kipf_kernel(lhat2_ref, x_ref, wf_ref, b_ref, rand_ref, o_ref, hist_ref,
                 *, K, TM, keep_prob, training):
    kk = pl.program_id(0)              # Chebyshev step, 0..K-1 (sequential)
    r = pl.program_id(1)               # node-row block (sequential, see header)
    row0 = pl.multiple_of(r * TM, TM)

    # ---- step 0: T_0 = x ----------------------------------------------------
    @pl.when(kk == 0)
    def _seed():
        hist_ref[0, pl.ds(row0, TM), :] = x_ref[...]

    # ---- step k >= 1: T_k = 2*L_hat @ T_{k-1} - T_{k-2} -----------------------
    @pl.when(kk > 0)
    def _recurrence():
        t_km1 = hist_ref[kk - 1]                       # (N_pad, F) bf16, all rows
        # bf16 operands, f32 accumulation on the MXU. 2.0 already folded in.
        t = jnp.dot(lhat2_ref[...], t_km1, preferred_element_type=jnp.float32)
        # T_1 = L_hat @ x = 0.5 * (2*L_hat) @ x
        t = jnp.where(kk == 1, 0.5 * t, t)
        prev2 = hist_ref[jnp.maximum(kk - 2, 0), pl.ds(row0, TM), :]
        t = t - jnp.where(kk >= 2, prev2.astype(jnp.float32), 0.0)
        hist_ref[kk, pl.ds(row0, TM), :] = t.astype(hist_ref.dtype)

    # ---- final step: fused projection + bias + ReLU + dropout ----------------
    @pl.when(kk == K - 1)
    def _project():
        # Stack T_0..T_{K-1} along lanes -> (TM, K*F): one deep-contraction
        # matmul instead of K matmuls with a tiny F_in contraction.
        parts = [hist_ref[j, pl.ds(row0, TM), :] for j in range(K)]
        stacked = parts[0] if K == 1 else jnp.concatenate(parts, axis=-1)
        out = jnp.dot(stacked, wf_ref[...], preferred_element_type=jnp.float32)
        out = out + b_ref[...]
        out = jnp.maximum(out, 0.0)                    # ReLU
        # TODO(synk): bn=True branch (BatchNorm1d) not implemented; module default is bn=False.
        if training and keep_prob < 1.0:
            keep = rand_ref[...] < keep_prob           # inverted dropout
            out = jnp.where(keep, out * (1.0 / keep_prob), 0.0)
        o_ref[...] = out.astype(o_ref.dtype)


def scaled_laplacian_dense(edge_index, num_nodes):
    """Dense L_hat = -(D^-1/2 A D^-1/2)  (sym normalization, lambda_max=2)."""
    row, col = edge_index[0], edge_index[1]
    a = jnp.zeros((num_nodes, num_nodes), jnp.float32)
    a = a.at[row, col].add(1.0)
    deg = a.sum(axis=1)
    dinv = jnp.where(deg > 0.0, 1.0 / jnp.sqrt(deg), 0.0)
    return -(dinv[:, None] * a * dinv[None, :])


def kipfblock_forward(x, edge_index, weight, bias, *, p=0.5, training=False,
                      dropout_key=None, row_block=256):
    """x: (N, F_in) f32, edge_index: (2, E) i32, weight: (K, F_in, H), bias: (H,).
    Returns (N, H) f32."""
    N, F = x.shape
    K, F_w, H = weight.shape
    assert F_w == F

    # Lane-dense output: pad H to a multiple of 128.
    H_pad = _round_up(H, 128)
    # Row-block tiling of L_hat rows / output rows.
    TM = row_block if N >= row_block else _round_up(max(N, 8), 8)
    N_pad = _round_up(N, TM)
    R = N_pad // TM

    # Precompute 2*L_hat once (folds the per-step 2.0), bf16 operands for MXU.
    lhat2 = (2.0 * scaled_laplacian_dense(edge_index, N)).astype(jnp.bfloat16)
    lhat2 = jnp.pad(lhat2, ((0, N_pad - N), (0, N_pad - N)))
    x_p = jnp.pad(x.astype(jnp.bfloat16), ((0, N_pad - N), (0, 0)))
    # Flatten weights to (K*F, H_pad): the K projections become ONE matmul.
    w_flat = jnp.pad(weight.astype(jnp.bfloat16).reshape(K * F, H),
                     ((0, 0), (0, H_pad - H)))
    b_p = jnp.pad(bias.astype(jnp.float32), (0, H_pad - H)).reshape(1, H_pad)

    if training and p > 0.0:
        key = dropout_key if dropout_key is not None else jax.random.PRNGKey(0)
        rand = jax.random.uniform(key, (N_pad, H_pad), dtype=jnp.float32)
    else:
        rand = jnp.ones((N_pad, H_pad), dtype=jnp.float32)   # unused in eval

    kernel = functools.partial(_kipf_kernel, K=K, TM=TM,
                               keep_prob=float(1.0 - p), training=bool(training))

    flops = 2 * (K - 1) * N_pad * N_pad * F + 2 * N_pad * (K * F) * H_pad
    bytes_accessed = (K * int(lhat2.size) * 2 + K * int(x_p.size) * 2
                      + int(w_flat.size) * 2 + int(b_p.size) * 4
                      + K * int(rand.size) * 4 + K * N_pad * H_pad * 4)

    grid_spec = pltpu.PrefetchScalarGridSpec(
        num_scalar_prefetch=0,
        grid=(K, R),
        in_specs=[
            pl.BlockSpec((TM, N_pad), lambda kk, r: (r, 0)),      # 2*L_hat row strip
            pl.BlockSpec((TM, F), lambda kk, r: (r, 0)),          # x row strip
            pl.BlockSpec((K * F, H_pad), lambda kk, r: (0, 0)),   # fused weights (resident)
            pl.BlockSpec((1, H_pad), lambda kk, r: (0, 0)),       # bias (resident)
            pl.BlockSpec((TM, H_pad), lambda kk, r: (r, 0)),      # dropout uniforms
        ],
        out_specs=pl.BlockSpec((TM, H_pad), lambda kk, r: (r, 0)),
        scratch_shapes=[pltpu.VMEM((K, N_pad, F), jnp.bfloat16)],  # T_0..T_{K-1} history
    )

    out = pl.pallas_call(
        kernel,
        out_shape=jax.ShapeDtypeStruct((N_pad, H_pad), jnp.float32),
        grid_spec=grid_spec,
        compiler_params=pltpu.CompilerParams(
            # Row axis must stay sequential: step k reads all rows of T_{k-1}.
            dimension_semantics=("arbitrary", "arbitrary"),
            vmem_limit_bytes=64 * 1024 * 1024,
        ),
        cost_estimate=pl.CostEstimate(flops=flops, transcendentals=0,
                                      bytes_accessed=bytes_accessed),
    )(lhat2, x_p, w_flat, b_p, rand)

    return out[:N, :H]


if __name__ == "__main__":
    # Small, module-consistent shapes.
    N = 32          # number of graph nodes
    n_input = 16    # input features
    n_hidden = 32   # output features
    K = 8           # Chebyshev filter size
    p = 0.5

    key = jax.random.PRNGKey(0)
    kx, kw, kb, kd = jax.random.split(key, 4)

    # Node features.
    x = jax.random.normal(kx, (N, n_input), dtype=jnp.float32)

    # Symmetric ring graph edge_index (2, 2N), no self loops.
    src = jnp.arange(N, dtype=jnp.int32)
    dst = (src + 1) % N
    edge_index = jnp.concatenate(
        [jnp.stack([src, dst]), jnp.stack([dst, src])], axis=1)

    # Deterministic parameter init (glorot-ish for the K Chebyshev linears).
    scale = (6.0 / (n_input + n_hidden)) ** 0.5
    weight = jax.random.uniform(kw, (K, n_input, n_hidden),
                                minval=-scale, maxval=scale, dtype=jnp.float32)
    bias = jax.random.uniform(kb, (n_hidden,), minval=-0.1, maxval=0.1,
                              dtype=jnp.float32)

    # Eval-mode forward (dropout is identity).
    out_eval = kipfblock_forward(x, edge_index, weight, bias, p=p, training=False)
    jax.block_until_ready(out_eval)

    # Loose numerical sanity check against a plain-JAX f32 reference
    # (kernel recurrence runs in bf16).
    lhat = scaled_laplacian_dense(edge_index, N)
    t_prev, t_cur = x, lhat @ x
    acc = x @ weight[0] + t_cur @ weight[1]
    for k in range(2, K):
        t_next = 2.0 * (lhat @ t_cur) - t_prev
        acc = acc + t_next @ weight[k]
        t_prev, t_cur = t_cur, t_next
    ref = jnp.maximum(acc + bias[None, :], 0.0)
    max_err = float(jnp.max(jnp.abs(out_eval - ref)))
    ref_scale = float(jnp.max(jnp.abs(ref)))
    assert max_err <= 0.1 * max(1.0, ref_scale), (max_err, ref_scale)

    # Training-mode forward (dropout mask from jax.random uniforms).
    out_train = kipfblock_forward(x, edge_index, weight, bias, p=p,
                                  training=True, dropout_key=kd)
    jax.block_until_ready(out_train)

    assert out_eval.shape == (N, n_hidden)
    assert out_train.shape == (N, n_hidden)
    assert bool(jnp.all(jnp.isfinite(out_train)))
    print("KERNEL_OK")
</pallas_src>

<mosaic_0001>
module attributes {stable_mosaic.version = 11 : i64} {
  func.func @_kipf_kernel(%arg0: i32, %arg1: i32, %arg2: memref<32x32xbf16, #tpu.memory_space<vmem>>, %arg3: memref<32x16xbf16, #tpu.memory_space<vmem>>, %arg4: memref<128x128xbf16, #tpu.memory_space<vmem>>, %arg5: memref<1x128xf32, #tpu.memory_space<vmem>>, %arg6: memref<32x128xf32, #tpu.memory_space<vmem>>, %arg7: memref<32x128xf32, #tpu.memory_space<vmem>>, %arg8: memref<8x32x16xbf16, #tpu.memory_space<vmem>>) attributes {dimension_semantics = [#tpu.dimension_semantics<arbitrary>, #tpu.dimension_semantics<arbitrary>], iteration_bounds = array<i64: 8, 1>, scalar_prefetch = 0 : i64, scratch_operands = 1 : i64, tpu.core_type = #tpu.core_type<tc>, window_params = [{transform_indices = @transform_0, window_bounds = array<i64: 32, 32>}, {transform_indices = @transform_1, window_bounds = array<i64: 32, 16>}, {pipeline_mode = #tpu.pipeline_mode<synchronous>, transform_indices = @transform_2, window_bounds = array<i64: 128, 128>}, {pipeline_mode = #tpu.pipeline_mode<synchronous>, transform_indices = @transform_3, window_bounds = array<i64: 1, 128>}, {transform_indices = @transform_4, window_bounds = array<i64: 32, 128>}, {transform_indices = @transform_5, window_bounds = array<i64: 32, 128>}]} {
    %c32_i32 = arith.constant 32 : i32
    %0 = arith.muli %arg1, %c32_i32 : i32
    %1 = tpu.assume_multiple %0, 32 : i32
    %c0_i32 = arith.constant 0 : i32
    %2 = arith.cmpi eq, %arg0, %c0_i32 : i32
    %3 = arith.extui %2 : i1 to i32
    %c0_i32_0 = arith.constant 0 : i32
    %4 = arith.cmpi ne, %3, %c0_i32_0 : i32
    scf.if %4 {
      %c0 = arith.constant 0 : index
      %c0_4 = arith.constant 0 : index
      %11 = vector.load %arg3[%c0, %c0_4] : memref<32x16xbf16, #tpu.memory_space<vmem>>, vector<32x16xbf16>
      %c0_5 = arith.constant 0 : index
      %12 = arith.index_cast %1 : i32 to index
      %c0_6 = arith.constant 0 : index
      %13 = vector.load %arg8[%c0_5, %12, %c0_6] : memref<8x32x16xbf16, #tpu.memory_space<vmem>>, vector<1x32x16xbf16>
      %14 = vector.shape_cast %13 : vector<1x32x16xbf16> to vector<32x16xbf16>
      %15 = vector.shape_cast %11 : vector<32x16xbf16> to vector<1x32x16xbf16>
      tpu.vector_store %arg8[%c0_5, %12, %c0_6], %15 {strides = array<i32>} : memref<8x32x16xbf16, #tpu.memory_space<vmem>>, vector<1x32x16xbf16>,
    } else {
    }
    %c0_i32_1 = arith.constant 0 : i32
    %5 = arith.cmpi sgt, %arg0, %c0_i32_1 : i32
    %6 = arith.extui %5 : i1 to i32
    %c0_i32_2 = arith.constant 0 : i32
    %7 = arith.cmpi ne, %6, %c0_i32_2 : i32
    scf.if %7 {
      %c1_i32 = arith.constant 1 : i32
      %11 = arith.subi %arg0, %c1_i32 : i32
      %12 = arith.index_cast %11 : i32 to index
      %c0 = arith.constant 0 : index
      %c0_4 = arith.constant 0 : index
      %13 = vector.load %arg8[%12, %c0, %c0_4] : memref<8x32x16xbf16, #tpu.memory_space<vmem>>, vector<1x32x16xbf16>
      %14 = vector.shape_cast %13 : vector<1x32x16xbf16> to vector<32x16xbf16>
      %c0_5 = arith.constant 0 : index
      %c0_6 = arith.constant 0 : index
      %15 = vector.load %arg2[%c0_5, %c0_6] : memref<32x32xbf16, #tpu.memory_space<vmem>>, vector<32x32xbf16>
      %cst = arith.constant dense<0.000000e+00> : vector<32x16xf32>
      %16 = tpu.matmul %15, %14, %cst {dimension_numbers = #tpu.dot_dimension_numbers<[1], [0], [0], [1], [0, 0, 1, 1], [], []>} : vector<32x32xbf16>, vector<32x16xbf16>, vector<32x16xf32> -> vector<32x16xf32>
      %c1_i32_7 = arith.constant 1 : i32
      %17 = arith.cmpi eq, %arg0, %c1_i32_7 : i32
      %cst_8 = arith.constant 5.000000e-01 : f32
      %18 = vector.broadcast %cst_8 : f32 to vector<32x16xf32>
      %19 = arith.mulf %18, %16 : vector<32x16xf32>
      %20 = arith.select %17, %19, %16 : vector<32x16xf32>
      %c2_i32 = arith.constant 2 : i32
      %21 = arith.subi %arg0, %c2_i32 : i32
      %c0_i32_9 = arith.constant 0 : i32
      %22 = arith.maxsi %21, %c0_i32_9 : i32
      %23 = arith.index_cast %22 : i32 to index
      %24 = arith.index_cast %1 : i32 to index
      %c0_10 = arith.constant 0 : index
      %25 = vector.load %arg8[%23, %24, %c0_10] : memref<8x32x16xbf16, #tpu.memory_space<vmem>>, vector<1x32x16xbf16>
      %26 = vector.shape_cast %25 : vector<1x32x16xbf16> to vector<32x16xbf16>
      %c2_i32_11 = arith.constant 2 : i32
      %27 = arith.cmpi sge, %arg0, %c2_i32_11 : i32
      %28 = arith.extf %26 : vector<32x16xbf16> to vector<32x16xf32>
      %cst_12 = arith.constant 0.000000e+00 : f32
      %29 = vector.broadcast %cst_12 : f32 to vector<32x16xf32>
      %30 = arith.select %27, %28, %29 : vector<32x16xf32>
      %31 = arith.subf %20, %30 : vector<32x16xf32>
      %32 = arith.truncf %31 : vector<32x16xf32> to vector<32x16xbf16>
      %33 = arith.index_cast %arg0 : i32 to index
      %34 = arith.index_cast %1 : i32 to index
      %c0_13 = arith.constant 0 : index
      %35 = vector.load %arg8[%33, %34, %c0_13] : memref<8x32x16xbf16, #tpu.memory_space<vmem>>, vector<1x32x16xbf16>
      %36 = vector.shape_cast %35 : vector<1x32x16xbf16> to vector<32x16xbf16>
      %37 = vector.shape_cast %32 : vector<32x16xbf16> to vector<1x32x16xbf16>
      tpu.vector_store %arg8[%33, %34, %c0_13], %37 {strides = array<i32>} : memref<8x32x16xbf16, #tpu.memory_space<vmem>>, vector<1x32x16xbf16>,
    } else {
    }
    %c7_i32 = arith.constant 7 : i32
    %8 = arith.cmpi eq, %arg0, %c7_i32 : i32
    %9 = arith.extui %8 : i1 to i32
    %c0_i32_3 = arith.constant 0 : i32
    %10 = arith.cmpi ne, %9, %c0_i32_3 : i32
    scf.if %10 {
      %c0 = arith.constant 0 : index
      %11 = arith.index_cast %1 : i32 to index
      %c0_4 = arith.constant 0 : index
      %12 = vector.load %arg8[%c0, %11, %c0_4] : memref<8x32x16xbf16, #tpu.memory_space<vmem>>, vector<1x32x16xbf16>
      %13 = vector.shape_cast %12 : vector<1x32x16xbf16> to vector<32x16xbf16>
      %c1 = arith.constant 1 : index
      %14 = arith.index_cast %1 : i32 to index
      %c0_5 = arith.constant 0 : index
      %15 = vector.load %arg8[%c1, %14, %c0_5] : memref<8x32x16xbf16, #tpu.memory_space<vmem>>, vector<1x32x16xbf16>
      %16 = vector.shape_cast %15 : vector<1x32x16xbf16> to vector<32x16xbf16>
      %c2 = arith.constant 2 : index
      %17 = arith.index_cast %1 : i32 to index
      %c0_6 = arith.constant 0 : index
      %18 = vector.load %arg8[%c2, %17, %c0_6] : memref<8x32x16xbf16, #tpu.memory_space<vmem>>, vector<1x32x16xbf16>
      %19 = vector.shape_cast %18 : vector<1x32x16xbf16> to vector<32x16xbf16>
      %c3 = arith.constant 3 : index
      %20 = arith.index_cast %1 : i32 to index
      %c0_7 = arith.constant 0 : index
      %21 = vector.load %arg8[%c3, %20, %c0_7] : memref<8x32x16xbf16, #tpu.memory_space<vmem>>, vector<1x32x16xbf16>
      %22 = vector.shape_cast %21 : vector<1x32x16xbf16> to vector<32x16xbf16>
      %c4 = arith.constant 4 : index
      %23 = arith.index_cast %1 : i32 to index
      %c0_8 = arith.constant 0 : index
      %24 = vector.load %arg8[%c4, %23, %c0_8] : memref<8x32x16xbf16, #tpu.memory_space<vmem>>, vector<1x32x16xbf16>
      %25 = vector.shape_cast %24 : vector<1x32x16xbf16> to vector<32x16xbf16>
      %c5 = arith.constant 5 : index
      %26 = arith.index_cast %1 : i32 to index
      %c0_9 = arith.constant 0 : index
      %27 = vector.load %arg8[%c5, %26, %c0_9] : memref<8x32x16xbf16, #tpu.memory_space<vmem>>, vector<1x32x16xbf16>
      %28 = vector.shape_cast %27 : vector<1x32x16xbf16> to vector<32x16xbf16>
      %c6 = arith.constant 6 : index
      %29 = arith.index_cast %1 : i32 to index
      %c0_10 = arith.constant 0 : index
      %30 = vector.load %arg8[%c6, %29, %c0_10] : memref<8x32x16xbf16, #tpu.memory_space<vmem>>, vector<1x32x16xbf16>
      %31 = vector.shape_cast %30 : vector<1x32x16xbf16> to vector<32x16xbf16>
      %c7 = arith.constant 7 : index
      %32 = arith.index_cast %1 : i32 to index
      %c0_11 = arith.constant 0 : index
      %33 = vector.load %arg8[%c7, %32, %c0_11] : memref<8x32x16xbf16, #tpu.memory_space<vmem>>, vector<1x32x16xbf16>
      %34 = vector.shape_cast %33 : vector<1x32x16xbf16> to vector<32x16xbf16>
      %35 = tpu.concatenate %13, %16, %19, %22, %25, %28, %31, %34 in 1 : vector<32x16xbf16>, vector<32x16xbf16>, vector<32x16xbf16>, vector<32x16xbf16>, vector<32x16xbf16>, vector<32x16xbf16>, vector<32x16xbf16>, vector<32x16xbf16> -> vector<32x128xbf16>
      %c0_12 = arith.constant 0 : index
      %c0_13 = arith.constant 0 : index
      %36 = vector.load %arg4[%c0_12, %c0_13] : memref<128x128xbf16, #tpu.memory_space<vmem>>, vector<128x128xbf16>
      %cst = arith.constant dense<0.000000e+00> : vector<32x128xf32>
      %37 = tpu.matmul %35, %36, %cst {dimension_numbers = #tpu.dot_dimension_numbers<[1], [0], [0], [1], [0, 0, 1, 1], [], []>} : vector<32x128xbf16>, vector<128x128xbf16>, vector<32x128xf32> -> vector<32x128xf32>
      %c0_14 = arith.constant 0 : index
      %c0_15 = arith.constant 0 : index
      %38 = vector.load %arg5[%c0_14, %c0_15] : memref<1x128xf32, #tpu.memory_space<vmem>>, vector<1x128xf32>
      %39 = vector.broadcast %38 : vector<1x128xf32> to vector<32x128xf32>
      %40 = arith.addf %37, %39 : vector<32x128xf32>
      %cst_16 = arith.constant 0.000000e+00 : f32
      %41 = vector.broadcast %cst_16 : f32 to vector<32x128xf32>
      %42 = arith.maximumf %40, %41 : vector<32x128xf32>
      %c0_17 = arith.constant 0 : index
      %c0_18 = arith.constant 0 : index
      %43 = vector.load %arg7[%c0_17, %c0_18] : memref<32x128xf32, #tpu.memory_space<vmem>>, vector<32x128xf32>
      tpu.vector_store %arg7[%c0_17, %c0_18], %42 {strides = array<i32>} : memref<32x128xf32, #tpu.memory_space<vmem>>, vector<32x128xf32>,
    } else {
    }
    return
  }
  func.func @transform_0(%arg0: i32, %arg1: i32) -> (i32, i32) {
    %c0_i32 = arith.constant 0 : i32
    %c0_i32_0 = arith.constant 0 : i32
    return %arg1, %c0_i32 : i32, i32
  }
  func.func @transform_1(%arg0: i32, %arg1: i32) -> (i32, i32) {
    %c0_i32 = arith.constant 0 : i32
    %c0_i32_0 = arith.constant 0 : i32
    return %arg1, %c0_i32 : i32, i32
  }
  func.func @transform_2(%arg0: i32, %arg1: i32) -> (i32, i32) {
    %c0_i32 = arith.constant 0 : i32
    %c0_i32_0 = arith.constant 0 : i32
    %c0_i32_1 = arith.constant 0 : i32
    return %c0_i32, %c0_i32_0 : i32, i32
  }
  func.func @transform_3(%arg0: i32, %arg1: i32) -> (i32, i32) {
    %c0_i32 = arith.constant 0 : i32
    %c0_i32_0 = arith.constant 0 : i32
    %c0_i32_1 = arith.constant 0 : i32
    return %c0_i32, %c0_i32_0 : i32, i32
  }
  func.func @transform_4(%arg0: i32, %arg1: i32) -> (i32, i32) {
    %c0_i32 = arith.constant 0 : i32
    %c0_i32_0 = arith.constant 0 : i32
    return %arg1, %c0_i32 : i32, i32
  }
  func.func @transform_5(%arg0: i32, %arg1: i32) -> (i32, i32) {
    %c0_i32 = arith.constant 0 : i32
    %c0_i32_0 = arith.constant 0 : i32
    return %arg1, %c0_i32 : i32, i32
  }
}

</mosaic_0001>

<llo_original>
// kernel: tpu_custom_call.1
$region0: #{tpu_custom_call.1}
  #allocation0 [shape = 'u32[]', space=smem, size = 0x4, offset = 0x4, fixed_abs, tag = 'smem constant byte address 0x4 - core index']
  #allocation1 [shape = 'u32[72,128]{1,0:T(1,128)}', space=vmem, size = 0x9000, scoped, tag = 'internal scratch']
  #allocation2 [shape = 'bf16[8,32,16]{2,1,0:T(8,128)(2,1)}', space=vmem, size = 0x10000, scoped, tag = 'scratch operand']
  %s0 = inlined_call_operand.vmem [shape: bf16[32,32], index: 0, kind: input, shape index: {}]
  %s1 = inlined_call_operand.vmem [shape: bf16[32,16], index: 1, kind: input, shape index: {}]
  %s2 = inlined_call_operand.hbm [shape: bf16[128,128], index: 2, kind: input, shape index: {}]
  %s3 = inlined_call_operand.vmem [shape: f32[1,128], index: 3, kind: input, shape index: {}]
  %s4 = inlined_call_operand.hbm [shape: f32[32,128], index: 4, kind: input, shape index: {}]
  %s5 = inlined_call_operand.hbm [shape: f32[32,128], index: 5, kind: output, shape index: {}]
  %s6 = sld [smem:[#allocation0]]
  $region73: #{tpu_custom_call.1} parent=0
    _
  %s8 = ssub.s32 1, %s6
  %s9 = scalar_select 0, %s8, %s6
  $region1: #{tpu_custom_call.1} parent=0
    #allocation3 [shape = 'u8[32768]{0}', space=vmem, size = 0x8000, scoped, tag = 'input window, operand 2, single buffered']
    #allocation4 [shape = 's32[2]{0}', space=sflag, size = 0x8, scoped, tag = 'scoped memory for tpu_custom_call.1']
    #allocation5 [shape = 's32[2]{0}', space=sflag, size = 0x8, scoped, tag = 'scoped memory for tpu_custom_call.1']
    #allocation6 [shape = 'u8[16384]{0}', space=vmem, size = 0x4000, scoped, tag = 'input window, operand 4, single buffered']
    #allocation7 [shape = 's32[1]{0}', space=sflag, size = 0x4, scoped, tag = 'scoped memory for tpu_custom_call.1']
    #allocation8 [shape = 'u8[16384]{0}', space=vmem, size = 0x4000, scoped, tag = 'output window, operand 0, single buffered']
    %10 = vsyncpa [#allocation4], 0
    %11 = vsyncpa [#allocation7], 0
    %12 = vsyncpa [#allocation5], 0
    loop: start=0, step=1, limit=10
    $region2: #{tpu_custom_call.1} parent=1 // loop_pre_header
      _
    $region3: #{tpu_custom_call.1} parent=1 // loop_header
      %s14 = sphi 0, %s18
      %p15 = scmp.ge.s32.totalorder %s14, 10
      %s21 = sphi 0, %s33
      %s22 = sphi 0, %s29
      %s23 = sphi 0, %s21
      %s24 = sphi 0, %s22
      %s25 = sphi 0, %s23
      %s26 = sphi 0, %s24
      %s36 = sphi 0, %s38
      %s39 = sphi 0, %s36
      %s40 = sphi 0, %s39
      %s56 = sphi 0, %s40
      %s62 = sphi 0, %s64
      %s65 = sphi 0, %s62
      %s66 = sphi 0, %s65
      %s82 = sphi 0, %s66
      %s86 = sphi 0, %s86
      %s88 = sphi 0, %s86
      %s89 = sphi 0, %s88
      %s103 = sphi 0, %s89
      %s107 = sphi 0, %s107
      %s109 = sphi 0, %s107
      %s110 = sphi 0, %s109
      %s124 = sphi 0, %s110
      %s130 = sphi 0, %s132
      %s133 = sphi 0, %s130
      %s134 = sphi 0, %s133
      %s150 = sphi 0, %s134
      %s156 = sphi 0, %s158
      %s159 = sphi 0, %s156
      %s160 = sphi 0, %s159
      %s176 = sphi 0, %s160
    $region4: #{tpu_custom_call.1} parent=1 // loop_header_branch
      %17 = sbr.rel (%p15) target = $region8
    $region5: #{tpu_custom_call.1} parent=1 // loop_body
      %s19 = ssub.s32 %s14, 1
      %s20 = ssub.s32 %s14, 2
      %s27 = sadd.s32 1, %s22
      %p28 = scmp.ge.s32.totalorder %s27, 1
      %s29 = scalar_select %p28, 0, %s27
      %s30 = sadd.s32 1, %s21
      %s31 = scalar_select %p28, %s30, %s21
      %p32 = scmp.ge.s32.totalorder %s31, 8
      %s33 = scalar_select %p32, 0, %s31
      %s34 = ssub.s32 %s22, %s29
      %p35 = scmp.eq.s32.totalorder %s34, 0
      %s37 = sadd.s32 %s36, 1
      %s38 = scalar_select %p35, %s36, %s37
      %p41 = pneg %p35
      %p42 = scmp.eq.s32.totalorder %s14, 7
      %p43 = por %p41, %p42
      %p44 = scmp.ne.s32.totalorder %s36, %s39
      %p45 = scmp.eq.s32.totalorder %s14, 0
      %p46 = por %p44, %p45
      %p47 = scmp.ne.s32.totalorder %s36, %s39
      %p48 = scmp.eq.s32.totalorder %s19, 7
      %p49 = por %p47, %p48
      %p50 = scmp.ne.s32.totalorder %s39, %s40
      %p51 = scmp.eq.s32.totalorder %s19, 0
      %p52 = por %p50, %p51
      %p53 = scmp.ne.s32.totalorder %s39, %s40
      %p54 = scmp.eq.s32.totalorder %s20, 7
      %p55 = por %p53, %p54
      %p57 = scmp.ne.s32.totalorder %s40, %s56
      %p58 = scmp.eq.s32.totalorder %s20, 0
      %p59 = por %p57, %p58
      %s60 = ssub.s32 %s22, %s29
      %p61 = scmp.eq.s32.totalorder %s60, 0
      %s63 = sadd.s32 %s62, 1
      %s64 = scalar_select %p61, %s62, %s63
      %p67 = pneg %p61
      %p68 = scmp.eq.s32.totalorder %s14, 7
      %p69 = por %p67, %p68
      %p70 = scmp.ne.s32.totalorder %s62, %s65
      %p71 = scmp.eq.s32.totalorder %s14, 0
      %p72 = por %p70, %p71
      %p73 = scmp.ne.s32.totalorder %s62, %s65
      %p74 = scmp.eq.s32.totalorder %s19, 7
      %p75 = por %p73, %p74
      %p76 = scmp.ne.s32.totalorder %s65, %s66
      %p77 = scmp.eq.s32.totalorder %s19, 0
      %p78 = por %p76, %p77
      %p79 = scmp.ne.s32.totalorder %s65, %s66
      %p80 = scmp.eq.s32.totalorder %s20, 7
      %p81 = por %p79, %p80
      %p83 = scmp.ne.s32.totalorder %s66, %s82
      %p84 = scmp.eq.s32.totalorder %s20, 0
      %p85 = por %p83, %p84
      %s87 = sadd.s32 %s86, 1
      %p90 = scmp.eq.s32.totalorder %s14, 7
      %p91 = scmp.ne.s32.totalorder %s86, %s88
      %p92 = scmp.eq.s32.totalorder %s14, 0
      %p93 = por %p91, %p92
      %p94 = scmp.ne.s32.totalorder %s86, %s88
      %p95 = scmp.eq.s32.totalorder %s19, 7
      %p96 = por %p94, %p95
      %p97 = scmp.ne.s32.totalorder %s88, %s89
      %p98 = scmp.eq.s32.totalorder %s19, 0
      %p99 = por %p97, %p98
      %p100 = scmp.ne.s32.totalorder %s88, %s89
      %p101 = scmp.eq.s32.totalorder %s20, 7
      %p102 = por %p100, %p101
      %p104 = scmp.ne.s32.totalorder %s89, %s103
      %p105 = scmp.eq.s32.totalorder %s20, 0
      %p106 = por %p104, %p105
      %s108 = sadd.s32 %s107, 1
      %p111 = scmp.eq.s32.totalorder %s14, 7
      %p112 = scmp.ne.s32.totalorder %s107, %s109
      %p113 = scmp.eq.s32.totalorder %s14, 0
      %p114 = por %p112, %p113
      %p115 = scmp.ne.s32.totalorder %s107, %s109
      %p116 = scmp.eq.s32.totalorder %s19, 7
      %p117 = por %p115, %p116
      %p118 = scmp.ne.s32.totalorder %s109, %s110
      %p119 = scmp.eq.s32.totalorder %s19, 0
      %p120 = por %p118, %p119
      %p121 = scmp.ne.s32.totalorder %s109, %s110
      %p122 = scmp.eq.s32.totalorder %s20, 7
      %p123 = por %p121, %p122
      %p125 = scmp.ne.s32.totalorder %s110, %s124
      %p126 = scmp.eq.s32.totalorder %s20, 0
      %p127 = por %p125, %p126
      %s128 = ssub.s32 %s22, %s29
      %p129 = scmp.eq.s32.totalorder %s128, 0
      %s131 = sadd.s32 %s130, 1
      %s132 = scalar_select %p129, %s130, %s131
      %p135 = pneg %p129
      %p136 = scmp.eq.s32.totalorder %s14, 7
      %p137 = por %p135, %p136
      %p138 = scmp.ne.s32.totalorder %s130, %s133
      %p139 = scmp.eq.s32.totalorder %s14, 0
      %p140 = por %p138, %p139
      %p141 = scmp.ne.s32.totalorder %s130, %s133
      %p142 = scmp.eq.s32.totalorder %s19, 7
      %p143 = por %p141, %p142
      %p144 = scmp.ne.s32.totalorder %s133, %s134
      %p145 = scmp.eq.s32.totalorder %s19, 0
      %p146 = por %p144, %p145
      %p147 = scmp.ne.s32.totalorder %s133, %s134
      %p148 = scmp.eq.s32.totalorder %s20, 7
      %p149 = por %p147, %p148
      %p151 = scmp.ne.s32.totalorder %s134, %s150
      %p152 = scmp.eq.s32.totalorder %s20, 0
      %p153 = por %p151, %p152
      %s154 = ssub.s32 %s22, %s29
      %p155 = scmp.eq.s32.totalorder %s154, 0
      %s157 = sadd.s32 %s156, 1
      %s158 = scalar_select %p155, %s156, %s157
      %p161 = pneg %p155
      %p162 = scmp.eq.s32.totalorder %s14, 7
      %p163 = por %p161, %p162
      %p164 = scmp.ne.s32.totalorder %s156, %s159
      %p165 = scmp.eq.s32.totalorder %s14, 0
      %p166 = por %p164, %p165
      %p167 = scmp.ne.s32.totalorder %s156, %s159
      %p168 = scmp.eq.s32.totalorder %s19, 7
      %p169 = por %p167, %p168
      %p170 = scmp.ne.s32.totalorder %s159, %s160
      %p171 = scmp.eq.s32.totalorder %s19, 0
      %p172 = por %p170, %p171
      %p173 = scmp.ne.s32.totalorder %s159, %s160
      %p174 = scmp.eq.s32.totalorder %s20, 7
      %p175 = por %p173, %p174
      %p177 = scmp.ne.s32.totalorder %s160, %s176
      %p178 = scmp.eq.s32.totalorder %s20, 0
      %p179 = por %p177, %p178
      %p180 = scmp.le.s32.totalorder 1, %s14
      %p181 = scmp.lt.s32.totalorder %s14, 9
      %p182 = pnand %p180, %p181
      %p183 = pneg %p182
      // Predicated region
      $region9: #{tpu_custom_call.1} parent=5 // pred_check
        _
      $region10: #{tpu_custom_call.1} parent=5 // pred_check_branch
        %185 = sbr.rel (%p182) target = $region12
      $region11: #{tpu_custom_call.1} parent=5 // pred_region
        %s186 = ssub.s32 %s14, 1
        // Predicated region
        $region13: #{tpu_custom_call.1} parent=11 // pred_check
          %p187 = pneg %p52
        $region14: #{tpu_custom_call.1} parent=11 // pred_check_branch
          %189 = sbr.rel (%p187) target = $region16
        $region15: #{tpu_custom_call.1} parent=11 // pred_region
          %s190 = smul.u32 4, %s24
          %p191 = scmp.lt.s32.totalorder %s190, 3
          %s192 = scalar_select %p191, %s190, 3
          %s193 = smul.addr %s192, 4
          %s194 = scalar_lea.vmem %s0, %s193
          %s195 = smul.u32 4, %s24
        $region16: #{tpu_custom_call.1} parent=11 // pred_fallthru
          _
        // Predicated region
        $region17: #{tpu_custom_call.1} parent=11 // pred_check
          %p196 = pneg %p78
        $region18: #{tpu_custom_call.1} parent=11 // pred_check_branch
          %198 = sbr.rel (%p196) target = $region20
        $region19: #{tpu_custom_call.1} parent=11 // pred_region
          %s199 = smul.u32 4, %s24
          %p200 = scmp.lt.s32.totalorder %s199, 3
          %s201 = scalar_select %p200, %s199, 3
          %s202 = smul.addr %s201, 4
          %s203 = scalar_lea.vmem %s1, %s202
          %s204 = smul.u32 4, %s24
        $region20: #{tpu_custom_call.1} parent=11 // pred_fallthru
          _
        // Predicated region
        $region21: #{tpu_custom_call.1} parent=11 // pred_check
          %p205 = pneg %p99
        $region22: #{tpu_custom_call.1} parent=11 // pred_check_branch
          %207 = sbr.rel (%p205) target = $region24
        $region23: #{tpu_custom_call.1} parent=11 // pred_region
          %209 = vsyncadd [#allocation4], 0
          %s210 = sshll.u32 %s2, 4
          %s211 = int_to_ptr.hbm [resolvable:$true] %s210
          %s212 = sshll.u32 [#allocation3], 4
          %s213 = int_to_ptr.vmem [resolvable:$true] %s212
          %218 = dma.hbm_to_vmem [thread:$0]  %s211, 1024, %s213, [#allocation4], 64, 64, 4
        $region24: #{tpu_custom_call.1} parent=11 // pred_fallthru
          _
        // Predicated region
        $region25: #{tpu_custom_call.1} parent=11 // pred_check
          %p219 = pneg %p120
        $region26: #{tpu_custom_call.1} parent=11 // pred_check_branch
          %221 = sbr.rel (%p219) target = $region28
        $region27: #{tpu_custom_call.1} parent=11 // pred_region
          _
        $region28: #{tpu_custom_call.1} parent=11 // pred_fallthru
          _
        // Predicated region
        $region29: #{tpu_custom_call.1} parent=11 // pred_check
          %p222 = pneg %p146
        $region30: #{tpu_custom_call.1} parent=11 // pred_check_branch
          %224 = sbr.rel (%p222) target = $region32
        $region31: #{tpu_custom_call.1} parent=11 // pred_region
          %s225 = smul.u32 4, %s24
          %227 = vsyncadd [#allocation7], 0
          %s228 = smul.addr %s225, 8
          %s229 = scalar_lea.hbm %s4, %s228
          %s230 = sshll.u32 %s229, 4
          %s231 = int_to_ptr.hbm [resolvable:$true] %s230
          %s232 = sshll.u32 [#allocation6], 4
          %s233 = int_to_ptr.vmem [resolvable:$true] %s232
          %238 = dma.hbm_to_vmem [thread:$0]  %s231, 512, %s233, [#allocation7], 128, 128, 8
        $region32: #{tpu_custom_call.1} parent=11 // pred_fallthru
          _
      $region12: #{tpu_custom_call.1} parent=5 // pred_fallthru
        _
      %p239 = scmp.lt.s32.totalorder %s14, 8
      // Predicated region
      $region33: #{tpu_custom_call.1} parent=5 // pred_check
        %p240 = pneg %p239
      $region34: #{tpu_custom_call.1} parent=5 // pred_check_branch
        %242 = sbr.rel (%p240) target = $region36
      $region35: #{tpu_custom_call.1} parent=5 // pred_region
        _
      $region36: #{tpu_custom_call.1} parent=5 // pred_fallthru
        _
      %p243 = scmp.le.s32.totalorder 1, %s14
      %p244 = scmp.lt.s32.totalorder %s14, 9
      %p245 = pnand %p243, %p244
      %p246 = pneg %p245
      // Predicated region
      $region37: #{tpu_custom_call.1} parent=5 // pred_check
        _
      $region38: #{tpu_custom_call.1} parent=5 // pred_check_branch
        %248 = sbr.rel (%p245) target = $region40
      $region39: #{tpu_custom_call.1} parent=5 // pred_region
        %s249 = ssub.s32 %s14, 1
        // Predicated region
        $region41: #{tpu_custom_call.1} parent=39 // pred_check
          %p250 = pneg %p99
        $region42: #{tpu_custom_call.1} parent=39 // pred_check_branch
          %252 = sbr.rel (%p250) target = $region44
        $region43: #{tpu_custom_call.1} parent=39 // pred_region
          %254 = dma.done [#allocation4], 1024
        $region44: #{tpu_custom_call.1} parent=39 // pred_fallthru
          _
        // Predicated region
        $region45: #{tpu_custom_call.1} parent=39 // pred_check
          %p255 = pneg %p146
        $region46: #{tpu_custom_call.1} parent=39 // pred_check_branch
          %257 = sbr.rel (%p255) target = $region48
        $region47: #{tpu_custom_call.1} parent=39 // pred_region
          %259 = dma.done [#allocation7], 512
        $region48: #{tpu_custom_call.1} parent=39 // pred_fallthru
          _
        %s260 = smul.u32 4, %s24
        %p261 = scmp.lt.s32.totalorder %s260, 3
        %s262 = scalar_select %p261, %s260, 3
        %s263 = smul.addr %s262, 4
        %s264 = scalar_lea.vmem %s0, %s263
        %p265 = pneg %p52
        %p266 = pneg %p49
        %s267 = smul.u32 4, %s24
        %p268 = scmp.lt.s32.totalorder %s267, 3
        %s269 = scalar_select %p268, %s267, 3
        %s270 = smul.addr %s269, 4
        %s271 = scalar_lea.vmem %s1, %s270
        %p272 = pneg %p78
        %p273 = pneg %p75
        %p274 = pneg %p99
        %p275 = pneg %p96
        %p276 = pneg %p120
        %p277 = pneg %p117
        %p278 = pneg %p146
        %p279 = pneg %p143
        %p280 = pneg %p172
        %p281 = pneg %p169
        %s282 = smul.u32 4, %s24
        %p283 = scmp.lt.s32.totalorder %s282, 3
        %s284 = scalar_select %p283, %s282, 3
        %s285 = smul.addr %s284, 4
        %s286 = scalar_lea.vmem %s0, %s285
        %s287 = smul.u32 4, %s24
        %s288 = smul.u32 4, %s24
        %p289 = scmp.lt.s32.totalorder %s288, 3
        %s290 = scalar_select %p289, %s288, 3
        %s291 = smul.addr %s290, 4
        %s292 = scalar_lea.vmem %s1, %s291
        %s293 = smul.u32 4, %s24
        %s294 = smul.u32 4, %s24
        %s295 = smul.u32 4, %s24
        %s297 = smul.u32 %s24, 32
        %p298 = scmp.eq.s32.totalorder %s23, 0
        // Predicated region
        $region49: #{tpu_custom_call.1} parent=39 // pred_check
          %p299 = pneg %p298
        $region50: #{tpu_custom_call.1} parent=39 // pred_check_branch
          %301 = sbr.rel (%p299) target = $region52
        $region51: #{tpu_custom_call.1} parent=39 // pred_region
          %v302 = vld [vmem:[%s292] sm:$0xf]
          %v303 = vld [vmem:[%s292 + $0x4] sm:$0xf]
          %v304 = vld [vmem:[%s292 + $0x8] sm:$0xf]
          %v305 = vld [vmem:[%s292 + $0xc] sm:$0xf]
          %s306 = sshra.s32 %s297, 3
          %s307 = sand.u32 %s297, 7
          %s308 = smul.addr %s306, 4
          %s309 = scalar_lea.vmem [#allocation2], %s308
          %vm310 = vcmask 125952
          %311 = vst.msk [vmem:[%s309] sm:$0xf] %vm310, %v302
          %312 = vst.msk [vmem:[%s309 + $0x4] sm:$0xf] %vm310, %v303
          %313 = vst.msk [vmem:[%s309 + $0x8] sm:$0xf] %vm310, %v304
          %314 = vst.msk [vmem:[%s309 + $0xc] sm:$0xf] %vm310, %v305
        $region52: #{tpu_custom_call.1} parent=39 // pred_fallthru
          _
        %p315 = scmp.gt.s32.totalorder %s23, 0
        // Predicated region
        $region53: #{tpu_custom_call.1} parent=39 // pred_check
          %p316 = pneg %p315
        $region54: #{tpu_custom_call.1} parent=39 // pred_check_branch
          %318 = sbr.rel (%p316) target = $region56
        $region55: #{tpu_custom_call.1} parent=39 // pred_region
          %s319 = ssub.s32 %s23, 1
          %s320 = smul.u32 %s319, 4
          %s321 = smul.addr %s320, 4
          %s322 = scalar_lea.vmem [#allocation2], %s321
          %v323 = vld [vmem:[%s322] sm:$0xf]
          %v324 = vld [vmem:[%s322 + $0x4] sm:$0xf]
          %v325 = vld [vmem:[%s322 + $0x8] sm:$0xf]
          %v326 = vld [vmem:[%s322 + $0xc] sm:$0xf]
          %v327 = vld [vmem:[%s286] sm:$0xf]
          %v328 = vld [vmem:[%s286 + $0x4] sm:$0xf]
          %v329 = vld [vmem:[%s286 + $0x8] sm:$0xf]
          %v330 = vld [vmem:[%s286 + $0xc] sm:$0xf]
          %v335 = vunpack.c.l.b16 %v327
          %v336 = vunpack.c.l.b16 %v328
          %v337 = vunpack.c.l.b16 %v329
          %v338 = vunpack.c.l.b16 %v330
          %v339 = vpack.c.b16 %v336, %v335
          %v340 = vpack.c.b16 %v338, %v337
          %v345 = vunpack.c.l.b16 %v323
          %v346 = vunpack.c.l.b16 %v324
          %v347 = vunpack.c.l.b16 %v325
          %v348 = vunpack.c.l.b16 %v326
          %v349 = vpack.c.b16 %v346, %v345
          %v350 = vpack.c.b16 %v348, %v347
          %vm353 = vcmask 261120
          %v355 = vsel %vm353, %v339, 0
          %v358 = vsel %vm353, %v340, 0
          %360 = vmatpush.bf16.msra.mxu0 0
          %361 = vmatpush.bf16.msra.mxu0 0
          %362 = vmatpush.bf16.msra.mxu0 0
          %363 = vmatpush.bf16.msra.mxu0 0
          %364 = vmatpush.bf16.msra.mxu0 0
          %365 = vmatpush.bf16.msra.mxu0 0
          %366 = vmatpush.bf16.msra.mxu0 %v350
          %367 = vmatpush.bf16.msra.mxu0 %v349
          %368 = vmatmul.bf16.gmra.mxu0 %v355
          %v369 = vpop.f32.mrf.mxu0
          %v370 = vadd.f32 0.0, %v369
          %v371 = vpop.f32.mrf.mxu0
          %v372 = vadd.f32 0.0, %v371
          %373 = vmatmul.bf16.gmra.mxu0 %v358
          %v374 = vpop.f32.mrf.mxu0
          %v375 = vadd.f32 0.0, %v374
          %v376 = vpop.f32.mrf.mxu0
          %v377 = vadd.f32 0.0, %v376
          %378 = vdwg.mxu0
          %p379 = scmp.eq.s32.totalorder %s23, 1
          %v380 = vmul.f32 %v370, 0.5
          %v381 = vmul.f32 %v372, 0.5
          %v382 = vmul.f32 %v375, 0.5
          %v383 = vmul.f32 %v377, 0.5
          %s384 = scalar_select %p379, 1, 0
          %v385 = vstv %s384
          %vm386 = vcmp.eq.s32.totalorder %v385, 1
          %v387 = vsel %vm386, %v380, %v370
          %v388 = vsel %vm386, %v381, %v372
          %v389 = vsel %vm386, %v382, %v375
          %v390 = vsel %vm386, %v383, %v377
          %s391 = ssub.s32 %s23, 2
          %p392 = scmp.gt.s32.totalorder %s391, 0
          %s393 = scalar_select %p392, %s391, 0
          %s394 = sshra.s32 %s297, 3
          %s395 = sand.u32 %s297, 7
          %s396 = smul.u32 %s393, 4
          %s397 = sadd.s32 %s394, %s396
          %s398 = smul.addr %s397, 4
          %s399 = scalar_lea.vmem [#allocation2], %s398
          %v400 = vld [vmem:[%s399] sm:$0xf]
          %v401 = vld [vmem:[%s399 + $0x4] sm:$0xf]
          %v402 = vld [vmem:[%s399 + $0x8] sm:$0xf]
          %v403 = vld [vmem:[%s399 + $0xc] sm:$0xf]
          %p404 = scmp.ge.s32.totalorder %s23, 2
          %v405 = vunpack.c.l.bf16 %v400
          %v406 = vunpack.c.l.bf16 %v401
          %v407 = vunpack.c.l.bf16 %v402
          %v408 = vunpack.c.l.bf16 %v403
          %s409 = scalar_select %p404, 1, 0
          %v410 = vstv %s409
          %vm411 = vcmp.eq.s32.totalorder %v410, 1
          %v412 = vsel %vm411, %v405, 0.0
          %v413 = vsel %vm411, %v406, 0.0
          %v414 = vsel %vm411, %v407, 0.0
          %v415 = vsel %vm411, %v408, 0.0
          %v416 = vsub.f32 %v387, %v412
          %v417 = vsub.f32 %v388, %v413
          %v418 = vsub.f32 %v389, %v414
          %v419 = vsub.f32 %v390, %v415
          %v420 = vpack.c.bf16 %v416, %v416
          %v421 = vpack.c.bf16 %v417, %v417
          %v422 = vpack.c.bf16 %v418, %v418
          %v423 = vpack.c.bf16 %v419, %v419
          %s424 = smul.u32 %s23, 4
          %s425 = sadd.s32 %s394, %s424
          %s426 = smul.addr %s425, 4
          %s427 = scalar_lea.vmem [#allocation2], %s426
          %vm428 = vcmask 125952
          %429 = vst.msk [vmem:[%s427] sm:$0xf] %vm428, %v420
          %430 = vst.msk [vmem:[%s427 + $0x4] sm:$0xf] %vm428, %v421
          %431 = vst.msk [vmem:[%s427 + $0x8] sm:$0xf] %vm428, %v422
          %432 = vst.msk [vmem:[%s427 + $0xc] sm:$0xf] %vm428, %v423
        $region56: #{tpu_custom_call.1} parent=39 // pred_fallthru
          _
        %p433 = scmp.eq.s32.totalorder %s23, 7
        // Predicated region
        $region57: #{tpu_custom_call.1} parent=39 // pred_check
          %p434 = pneg %p433
        $region58: #{tpu_custom_call.1} parent=39 // pred_check_branch
          %436 = sbr.rel (%p434) target = $region60
        $region59: #{tpu_custom_call.1} parent=39 // pred_region
          %s437 = sshra.s32 %s297, 3
          %s438 = sand.u32 %s297, 7
          %s439 = smul.addr %s437, 4
          %s440 = scalar_lea.vmem [#allocation2], %s439
          %v441 = vld [vmem:[%s440] sm:$0xf]
          %v442 = vld [vmem:[%s440 + $0x4] sm:$0xf]
          %v443 = vld [vmem:[%s440 + $0x8] sm:$0xf]
          %v444 = vld [vmem:[%s440 + $0xc] sm:$0xf]
          %s445 = sadd.s32 %s437, 4
          %s446 = smul.addr %s445, 4
          %s447 = scalar_lea.vmem [#allocation2], %s446
          %v448 = vld [vmem:[%s447] sm:$0xf]
          %v449 = vld [vmem:[%s447 + $0x4] sm:$0xf]
          %v450 = vld [vmem:[%s447 + $0x8] sm:$0xf]
          %v451 = vld [vmem:[%s447 + $0xc] sm:$0xf]
          %s452 = sadd.s32 %s437, 8
          %s453 = smul.addr %s452, 4
          %s454 = scalar_lea.vmem [#allocation2], %s453
          %v455 = vld [vmem:[%s454] sm:$0xf]
          %v456 = vld [vmem:[%s454 + $0x4] sm:$0xf]
          %v457 = vld [vmem:[%s454 + $0x8] sm:$0xf]
          %v458 = vld [vmem:[%s454 + $0xc] sm:$0xf]
          %s459 = sadd.s32 %s437, 12
          %s460 = smul.addr %s459, 4
          %s461 = scalar_lea.vmem [#allocation2], %s460
          %v462 = vld [vmem:[%s461] sm:$0xf]
          %v463 = vld [vmem:[%s461 + $0x4] sm:$0xf]
          %v464 = vld [vmem:[%s461 + $0x8] sm:$0xf]
          %v465 = vld [vmem:[%s461 + $0xc] sm:$0xf]
          %s466 = sadd.s32 %s437, 16
          %s467 = smul.addr %s466, 4
          %s468 = scalar_lea.vmem [#allocation2], %s467
          %v469 = vld [vmem:[%s468] sm:$0xf]
          %v470 = vld [vmem:[%s468 + $0x4] sm:$0xf]
          %v471 = vld [vmem:[%s468 + $0x8] sm:$0xf]
          %v472 = vld [vmem:[%s468 + $0xc] sm:$0xf]
          %s473 = sadd.s32 %s437, 20
          %s474 = smul.addr %s473, 4
          %s475 = scalar_lea.vmem [#allocation2], %s474
          %v476 = vld [vmem:[%s475] sm:$0xf]
          %v477 = vld [vmem:[%s475 + $0x4] sm:$0xf]
          %v478 = vld [vmem:[%s475 + $0x8] sm:$0xf]
          %v479 = vld [vmem:[%s475 + $0xc] sm:$0xf]
          %s480 = sadd.s32 %s437, 24
          %s481 = smul.addr %s480, 4
          %s482 = scalar_lea.vmem [#allocation2], %s481
          %v483 = vld [vmem:[%s482] sm:$0xf]
          %v484 = vld [vmem:[%s482 + $0x4] sm:$0xf]
          %v485 = vld [vmem:[%s482 + $0x8] sm:$0xf]
          %v486 = vld [vmem:[%s482 + $0xc] sm:$0xf]
          %s487 = sadd.s32 %s437, 28
          %s488 = smul.addr %s487, 4
          %s489 = scalar_lea.vmem [#allocation2], %s488
          %v490 = vld [vmem:[%s489] sm:$0xf]
          %v491 = vld [vmem:[%s489 + $0x4] sm:$0xf]
          %v492 = vld [vmem:[%s489 + $0x8] sm:$0xf]
          %v493 = vld [vmem:[%s489 + $0xc] sm:$0xf]
          %v498 = vunpack.c.l.b16 %v441
          %v499 = vunpack.c.l.b16 %v442
          %v500 = vunpack.c.l.b16 %v443
          %v501 = vunpack.c.l.b16 %v444
          %v502 = vpack.c.b16 %v499, %v498
          %v503 = vpack.c.b16 %v501, %v500
          %v508 = vunpack.c.l.b16 %v448
          %v509 = vunpack.c.l.b16 %v449
          %v510 = vunpack.c.l.b16 %v450
          %v511 = vunpack.c.l.b16 %v451
          %v512 = vpack.c.b16 %v509, %v508
          %v513 = vpack.c.b16 %v511, %v510
          %514 = vrot.lane.b32.xlu0 %v512, 16
          %v515 = vpop.permute.xlu0 %514
          %516 = vrot.lane.b32.xlu0 %v513, 16
          %v517 = vpop.permute.xlu0 %516
          %v522 = vunpack.c.l.b16 %v455
          %v523 = vunpack.c.l.b16 %v456
          %v524 = vunpack.c.l.b16 %v457
          %v525 = vunpack.c.l.b16 %v458
          %v526 = vpack.c.b16 %v523, %v522
          %v527 = vpack.c.b16 %v525, %v524
          %528 = vrot.lane.b32.xlu0 %v526, 32
          %v529 = vpop.permute.xlu0 %528
          %530 = vrot.lane.b32.xlu0 %v527, 32
          %v531 = vpop.permute.xlu0 %530
          %v536 = vunpack.c.l.b16 %v462
          %v537 = vunpack.c.l.b16 %v463
          %v538 = vunpack.c.l.b16 %v464
          %v539 = vunpack.c.l.b16 %v465
          %v540 = vpack.c.b16 %v537, %v536
          %v541 = vpack.c.b16 %v539, %v538
          %542 = vrot.lane.b32.xlu0 %v540, 48
          %v543 = vpop.permute.xlu0 %542
          %544 = vrot.lane.b32.xlu0 %v541, 48
          %v545 = vpop.permute.xlu0 %544
          %v550 = vunpack.c.l.b16 %v469
          %v551 = vunpack.c.l.b16 %v470
          %v552 = vunpack.c.l.b16 %v471
          %v553 = vunpack.c.l.b16 %v472
          %v554 = vpack.c.b16 %v551, %v550
          %v555 = vpack.c.b16 %v553, %v552
          %556 = vrot.lane.b32.xlu0 %v554, 64
          %v557 = vpop.permute.xlu0 %556
          %558 = vrot.lane.b32.xlu0 %v555, 64
          %v559 = vpop.permute.xlu0 %558
          %v564 = vunpack.c.l.b16 %v476
          %v565 = vunpack.c.l.b16 %v477
          %v566 = vunpack.c.l.b16 %v478
          %v567 = vunpack.c.l.b16 %v479
          %v568 = vpack.c.b16 %v565, %v564
          %v569 = vpack.c.b16 %v567, %v566
          %570 = vrot.lane.b32.xlu0 %v568, 80
          %v571 = vpop.permute.xlu0 %570
          %572 = vrot.lane.b32.xlu0 %v569, 80
          %v573 = vpop.permute.xlu0 %572
          %v578 = vunpack.c.l.b16 %v483
          %v579 = vunpack.c.l.b16 %v484
          %v580 = vunpack.c.l.b16 %v485
          %v581 = vunpack.c.l.b16 %v486
          %v582 = vpack.c.b16 %v579, %v578
          %v583 = vpack.c.b16 %v581, %v580
          %584 = vrot.lane.b32.xlu0 %v582, 96
          %v585 = vpop.permute.xlu0 %584
          %586 = vrot.lane.b32.xlu0 %v583, 96
          %v587 = vpop.permute.xlu0 %586
          %v592 = vunpack.c.l.b16 %v490
          %v593 = vunpack.c.l.b16 %v491
          %v594 = vunpack.c.l.b16 %v492
          %v595 = vunpack.c.l.b16 %v493
          %v596 = vpack.c.b16 %v593, %v592
          %v597 = vpack.c.b16 %v595, %v594
          %598 = vrot.lane.b32.xlu0 %v596, 112
          %v599 = vpop.permute.xlu0 %598
          %600 = vrot.lane.b32.xlu0 %v597, 112
          %v601 = vpop.permute.xlu0 %600
          %vm602 = vcmask 130048
          %v605 = vsel %vm602, %v502, %v515
          %v608 = vsel %vm602, %v503, %v517
          %vm609 = vcmask 261120
          %v611 = vsel %vm609, %v605, %v529
          %v613 = vsel %vm609, %v608, %v531
          %vm614 = vcmask 392192
          %v616 = vsel %vm614, %v611, %v543
          %v618 = vsel %vm614, %v613, %v545
          %vm619 = vcmask 523264
          %v621 = vsel %vm619, %v616, %v557
          %v623 = vsel %vm619, %v618, %v559
          %vm624 = vcmask 654336
          %v626 = vsel %vm624, %v621, %v571
          %v628 = vsel %vm624, %v623, %v573
          %vm629 = vcmask 785408
          %v631 = vsel %vm629, %v626, %v585
          %v633 = vsel %vm629, %v628, %v587
          %vm634 = vcmask 916480
          %v636 = vsel %vm634, %v631, %v599
          %v639 = vsel %vm634, %v633, %v601
          %v641 = vld [vmem:[#allocation3] sm:$0xf]
          %v642 = vld [vmem:[#allocation3 + $0x4] sm:$0xf]
          %v643 = vld [vmem:[#allocation3 + $0x8] sm:$0xf]
          %v644 = vld [vmem:[#allocation3 + $0xc] sm:$0xf]
          %v645 = vld [vmem:[#allocation3 + $0x10] sm:$0xf]
          %v646 = vld [vmem:[#allocation3 + $0x14] sm:$0xf]
          %v647 = vld [vmem:[#allocation3 + $0x18] sm:$0xf]
          %v648 = vld [vmem:[#allocation3 + $0x1c] sm:$0xf]
          %v649 = vld [vmem:[#allocation3 + $0x20] sm:$0xf]
          %v650 = vld [vmem:[#allocation3 + $0x24] sm:$0xf]
          %v651 = vld [vmem:[#allocation3 + $0x28] sm:$0xf]
          %v652 = vld [vmem:[#allocation3 + $0x2c] sm:$0xf]
          %v653 = vld [vmem:[#allocation3 + $0x30] sm:$0xf]
          %v654 = vld [vmem:[#allocation3 + $0x34] sm:$0xf]
          %v655 = vld [vmem:[#allocation3 + $0x38] sm:$0xf]
          %v656 = vld [vmem:[#allocation3 + $0x3c] sm:$0xf]
          %v657 = vld [vmem:[%s3] sm:$0x1]
          %v659 = vperm.slane %v657, 0
          %v677 = vunpack.c.l.b16 %v641
          %v678 = vunpack.c.l.b16 %v642
          %v679 = vunpack.c.l.b16 %v643
          %v680 = vunpack.c.l.b16 %v644
          %v681 = vunpack.c.l.b16 %v645
          %v682 = vunpack.c.l.b16 %v646
          %v683 = vunpack.c.l.b16 %v647
          %v684 = vunpack.c.l.b16 %v648
          %v685 = vunpack.c.l.b16 %v649
          %v686 = vunpack.c.l.b16 %v650
          %v687 = vunpack.c.l.b16 %v651
          %v688 = vunpack.c.l.b16 %v652
          %v689 = vunpack.c.l.b16 %v653
          %v690 = vunpack.c.l.b16 %v654
          %v691 = vunpack.c.l.b16 %v655
          %v692 = vunpack.c.l.b16 %v656
          %v693 = vpack.c.b16 %v678, %v677
          %v694 = vpack.c.b16 %v680, %v679
          %v695 = vpack.c.b16 %v682, %v681
          %v696 = vpack.c.b16 %v684, %v683
          %v697 = vpack.c.b16 %v686, %v685
          %v698 = vpack.c.b16 %v688, %v687
          %v699 = vpack.c.b16 %v690, %v689
          %v700 = vpack.c.b16 %v692, %v691
          %709 = vmatpush.bf16.msra.mxu0 %v700
          %710 = vmatpush.bf16.msra.mxu0 %v699
          %711 = vmatpush.bf16.msra.mxu0 %v698
          %712 = vmatpush.bf16.msra.mxu0 %v697
          %713 = vmatpush.bf16.msra.mxu0 %v696
          %714 = vmatpush.bf16.msra.mxu0 %v695
          %715 = vmatpush.bf16.msra.mxu0 %v694
          %716 = vmatpush.bf16.msra.mxu0 %v693
          %717 = vmatmul.bf16.gmra.mxu0 %v636
          %v718 = vpop.f32.mrf.mxu0
          %v719 = vadd.f32 %v659, %v718
          %v720 = vpop.f32.mrf.mxu0
          %v721 = vadd.f32 %v659, %v720
          %722 = vmatmul.bf16.gmra.mxu0 %v639
          %v723 = vpop.f32.mrf.mxu0
          %v724 = vadd.f32 %v659, %v723
          %v725 = vpop.f32.mrf.mxu0
          %v726 = vadd.f32 %v659, %v725
          %727 = vdwg.mxu0
          %v728 = vmax.f32 %v719, 0.0
          %v729 = vmax.f32 %v721, 0.0
          %v730 = vmax.f32 %v724, 0.0
          %v731 = vmax.f32 %v726, 0.0
          %732 = vst [vmem:[#allocation8] sm:$0xff] %v728
          %733 = vst [vmem:[#allocation8 + $0x8] sm:$0xff] %v729
          %734 = vst [vmem:[#allocation8 + $0x10] sm:$0xff] %v730
          %735 = vst [vmem:[#allocation8 + $0x18] sm:$0xff] %v731
        $region60: #{tpu_custom_call.1} parent=39 // pred_fallthru
          _
        // Predicated region
        $region61: #{tpu_custom_call.1} parent=39 // pred_check
          %p736 = pneg %p169
        $region62: #{tpu_custom_call.1} parent=39 // pred_check_branch
          %738 = sbr.rel (%p736) target = $region64
        $region63: #{tpu_custom_call.1} parent=39 // pred_region
          %s739 = smul.u32 4, %s24
          %741 = vsyncadd [#allocation5], 0
          %s742 = smul.addr %s739, 8
          %s743 = scalar_lea.hbm %s5, %s742
          %s744 = sshll.u32 [#allocation8], 4
          %s745 = int_to_ptr.vmem [resolvable:$true] %s744
          %s746 = sshll.u32 %s743, 4
          %s747 = int_to_ptr.hbm [resolvable:$true] %s746
          %752 = dma.vmem_to_hbm [thread:$0]  %s745, 512, %s747, [#allocation5], 128, 128, 8
        $region64: #{tpu_custom_call.1} parent=39 // pred_fallthru
          _
        // Predicated region
        $region65: #{tpu_custom_call.1} parent=39 // pred_check
          %p753 = pneg %p169
        $region66: #{tpu_custom_call.1} parent=39 // pred_check_branch
          %755 = sbr.rel (%p753) target = $region68
        $region67: #{tpu_custom_call.1} parent=39 // pred_region
          %757 = dma.done [#allocation5], 512
        $region68: #{tpu_custom_call.1} parent=39 // pred_fallthru
          _
      $region40: #{tpu_custom_call.1} parent=5 // pred_fallthru
        _
      %p758 = scmp.le.s32.totalorder 2, %s14
      // Predicated region
      $region69: #{tpu_custom_call.1} parent=5 // pred_check
        %p759 = pneg %p758
      $region70: #{tpu_custom_call.1} parent=5 // pred_check_branch
        %761 = sbr.rel (%p759) target = $region72
      $region71: #{tpu_custom_call.1} parent=5 // pred_region
        %s762 = ssub.s32 %s14, 2
      $region72: #{tpu_custom_call.1} parent=5 // pred_fallthru
        _
    $region6: #{tpu_custom_call.1} parent=1 // loop_footer
      %s18 = sadd.s32 1, %s14
    $region7: #{tpu_custom_call.1} parent=1 // loop_footer_branch
      %13 = sbr.rel target = $region3
    $region8: #{tpu_custom_call.1} parent=1 // loop_exit
      _
    %763 = vsyncpa [#allocation4], 1
    %s764 = scalar_lea.sflag [#allocation4], 1
    %765 = vsyncpa %s764, 1
    %766 = vsyncpa [#allocation7], 1
    %767 = vsyncpa [#allocation5], 1
    %s768 = scalar_lea.sflag [#allocation5], 1
    %769 = vsyncpa %s768, 1

</llo_original>
